<compile_context>
chip_gen: v7x
topology: tpu7x:2x2x1
jax: 0.10.0
libtpu: 0.0.40
codegen_flags: <defaults>
</compile_context>

<pallas_src>
import jax
import jax.numpy as jnp
from jax.experimental import pallas as pl
from jax.experimental.pallas import tpu as pltpu


def _round_up(v: int, m: int) -> int:
    return (v + m - 1) // m * m


def gcn_kernel(x_ref, wt_ref, b_ref, adj_ref, o_ref, acc_ref):
    i = pl.program_id(0)
    k = pl.program_id(1)

    @pl.when(k == 0)
    def _init():
        acc_ref[...] = jnp.zeros_like(acc_ref)

    # h for the current *column* block of adj: (T, in_dim) @ (in_dim, OUT_P) + b.
    # Recomputed per (i, k) tile; cheap since in_dim << T.
    h_k = jnp.dot(x_ref[...], wt_ref[...],
                  preferred_element_type=jnp.float32) + b_ref[...]

    # Aggregation: adj tile (bf16, exact small-int edge counts) @ h_k (bf16),
    # accumulated in f32 on the MXU.
    acc_ref[...] += jnp.dot(adj_ref[...], h_k.astype(jnp.bfloat16),
                            preferred_element_type=jnp.float32)

    # Residual "+ h": when the column block equals the row block, h_k is exactly
    # the h of this output row block. Added once per i, in full f32.
    @pl.when(k == i)
    def _residual():
        acc_ref[...] += h_k

    @pl.when(k == pl.num_programs(1) - 1)
    def _store():
        o_ref[...] = acc_ref[...].astype(o_ref.dtype)


def graph_conv_layer(x, edge_index, weight, bias, *, tile: int = 512):
    """x: (N, in_dim); edge_index: (2, E) int32; weight: (out_dim, in_dim); bias: (out_dim,)."""
    n, in_dim = x.shape
    out_dim = weight.shape[0]

    # Tile size: multiple of 128, no larger than the (128-rounded) node count.
    tile = max(128, min(_round_up(tile, 128), _round_up(n, 128)))
    n_pad = _round_up(n, tile)
    out_pad = _round_up(out_dim, 128)   # lane-dense output / full MXU N width

    # --- Glue (plain JAX): dense edge-count adjacency, padded, bf16.
    # Exact while per-(i,j) edge multiplicity < 256; duplicate edges add like index_add_.
    row, col = edge_index
    adj = (jnp.zeros((n_pad, n_pad), jnp.float32)
           .at[row, col].add(1.0)
           .astype(jnp.bfloat16))

    # Padded operands (padded x rows / W^T & bias columns are zero; padded adj
    # columns are zero so padded h rows never contribute; padded output is sliced).
    x_p = jnp.zeros((n_pad, in_dim), jnp.float32).at[:n, :].set(x.astype(jnp.float32))
    wt = jnp.zeros((in_dim, out_pad), jnp.float32).at[:, :out_dim].set(
        weight.T.astype(jnp.float32))
    b2 = jnp.zeros((1, out_pad), jnp.float32).at[0, :out_dim].set(
        bias.astype(jnp.float32))

    grid = (n_pad // tile, n_pad // tile)

    # VMEM budget: double-buffered inputs/outputs + accumulator scratch (+50% slack).
    vmem_bytes = (2 * tile * tile * 2          # adj tile, bf16, 2 buffers
                  + 2 * tile * in_dim * 4      # x block, 2 buffers
                  + 2 * in_dim * out_pad * 4   # W^T
                  + 2 * out_pad * 4            # bias
                  + 2 * tile * out_pad * 4     # out block, 2 buffers
                  + tile * out_pad * 4)        # accumulator scratch
    vmem_limit = min(max(int(vmem_bytes * 1.5), 16 * 1024 * 1024), 64 * 1024 * 1024)

    cost = pl.CostEstimate(
        flops=int(2 * n_pad * n_pad * out_pad
                  + 2 * grid[1] * n_pad * in_dim * out_pad),
        transcendentals=0,
        bytes_accessed=int(n_pad * n_pad * 2
                           + grid[1] * n_pad * in_dim * 4
                           + in_dim * out_pad * 4
                           + n_pad * out_pad * 4),
    )

    out_pad_arr = pl.pallas_call(
        gcn_kernel,
        out_shape=jax.ShapeDtypeStruct((n_pad, out_pad), jnp.float32),
        grid_spec=pltpu.PrefetchScalarGridSpec(
            num_scalar_prefetch=0,
            grid=grid,
            in_specs=[
                pl.BlockSpec((tile, in_dim), lambda i, k: (k, 0)),    # x (col block)
                pl.BlockSpec((in_dim, out_pad), lambda i, k: (0, 0)), # W^T
                pl.BlockSpec((1, out_pad), lambda i, k: (0, 0)),      # bias
                pl.BlockSpec((tile, tile), lambda i, k: (i, k)),      # adj tile
            ],
            out_specs=pl.BlockSpec((tile, out_pad), lambda i, k: (i, 0)),
            scratch_shapes=[pltpu.VMEM((tile, out_pad), jnp.float32)],
        ),
        compiler_params=pltpu.CompilerParams(
            dimension_semantics=("parallel", "arbitrary"),
            vmem_limit_bytes=vmem_limit,
        ),
        cost_estimate=cost,
    )(x_p, wt, b2, adj)

    return out_pad_arr[:n, :out_dim]


if __name__ == "__main__":
    key = jax.random.PRNGKey(0)
    k_x, k_w, k_b, k_e = jax.random.split(key, 4)

    # Small shapes; tile=128 so the (i, k) grid and padding paths are exercised.
    n_nodes, in_dim, out_dim, n_edges = 200, 8, 32, 512

    # Deterministic nn.Linear-style init: U(-1/sqrt(in_dim), 1/sqrt(in_dim))
    bound = 1.0 / (in_dim ** 0.5)
    weight = jax.random.uniform(k_w, (out_dim, in_dim), jnp.float32, -bound, bound)
    bias = jax.random.uniform(k_b, (out_dim,), jnp.float32, -bound, bound)

    x = jax.random.normal(k_x, (n_nodes, in_dim), jnp.float32)
    edge_index = jax.random.randint(k_e, (2, n_edges), 0, n_nodes, jnp.int32)

    out = graph_conv_layer(x, edge_index, weight, bias, tile=128)
    out = jax.block_until_ready(out)

    # Pure-JAX f32 reference (same math, no Pallas).
    h_ref = x @ weight.T + bias
    ref = jnp.zeros_like(h_ref).at[edge_index[0]].add(h_ref[edge_index[1]]) + h_ref

    assert out.shape == (n_nodes, out_dim)
    # Aggregation matmul runs with bf16 operands (f32 accumulate); tolerance covers
    # the ~2^-9 relative rounding of h times the per-node in-degree.
    max_err = float(jnp.max(jnp.abs(out - ref)))
    assert jnp.allclose(out, ref, atol=5e-2, rtol=5e-2), max_err

    print("KERNEL_OK")
</pallas_src>

<mosaic_0001>
module attributes {stable_mosaic.version = 11 : i64} {
  func.func @gcn_kernel(%arg0: i32, %arg1: i32, %arg2: memref<128x8xf32, #tpu.memory_space<vmem>>, %arg3: memref<8x128xf32, #tpu.memory_space<vmem>>, %arg4: memref<1x128xf32, #tpu.memory_space<vmem>>, %arg5: memref<128x128xbf16, #tpu.memory_space<vmem>>, %arg6: memref<128x128xf32, #tpu.memory_space<vmem>>, %arg7: memref<128x128xf32, #tpu.memory_space<vmem>>) attributes {dimension_semantics = [#tpu.dimension_semantics<parallel>, #tpu.dimension_semantics<arbitrary>], iteration_bounds = array<i64: 2, 2>, scalar_prefetch = 0 : i64, scratch_operands = 1 : i64, tpu.core_type = #tpu.core_type<tc>, window_params = [{transform_indices = @transform_0, window_bounds = array<i64: 128, 8>}, {pipeline_mode = #tpu.pipeline_mode<synchronous>, transform_indices = @transform_1, window_bounds = array<i64: 8, 128>}, {pipeline_mode = #tpu.pipeline_mode<synchronous>, transform_indices = @transform_2, window_bounds = array<i64: 1, 128>}, {transform_indices = @transform_3, window_bounds = array<i64: 128, 128>}, {transform_indices = @transform_4, window_bounds = array<i64: 128, 128>}]} {
    %c0_i32 = arith.constant 0 : i32
    %0 = arith.cmpi eq, %arg1, %c0_i32 : i32
    %1 = arith.extui %0 : i1 to i32
    %c0_i32_0 = arith.constant 0 : i32
    %2 = arith.cmpi ne, %1, %c0_i32_0 : i32
    scf.if %2 {
      %cst_15 = arith.constant 0.000000e+00 : f32
      %21 = vector.broadcast %cst_15 : f32 to vector<128x128xf32>
      %c0_16 = arith.constant 0 : index
      %c0_17 = arith.constant 0 : index
      %22 = vector.load %arg7[%c0_16, %c0_17] : memref<128x128xf32, #tpu.memory_space<vmem>>, vector<128x128xf32>
      tpu.vector_store %arg7[%c0_16, %c0_17], %21 {strides = array<i32>} : memref<128x128xf32, #tpu.memory_space<vmem>>, vector<128x128xf32>,
    } else {
    }
    %c0 = arith.constant 0 : index
    %c0_1 = arith.constant 0 : index
    %3 = vector.load %arg2[%c0, %c0_1] : memref<128x8xf32, #tpu.memory_space<vmem>>, vector<128x8xf32>
    %c0_2 = arith.constant 0 : index
    %c0_3 = arith.constant 0 : index
    %4 = vector.load %arg3[%c0_2, %c0_3] : memref<8x128xf32, #tpu.memory_space<vmem>>, vector<8x128xf32>
    %cst = arith.constant dense<0.000000e+00> : vector<128x128xf32>
    %5 = tpu.matmul %3, %4, %cst {dimension_numbers = #tpu.dot_dimension_numbers<[1], [0], [0], [1], [0, 0, 1, 1], [], []>} : vector<128x8xf32>, vector<8x128xf32>, vector<128x128xf32> -> vector<128x128xf32>
    %c0_4 = arith.constant 0 : index
    %c0_5 = arith.constant 0 : index
    %6 = vector.load %arg4[%c0_4, %c0_5] : memref<1x128xf32, #tpu.memory_space<vmem>>, vector<1x128xf32>
    %7 = vector.broadcast %6 : vector<1x128xf32> to vector<128x128xf32>
    %8 = arith.addf %5, %7 : vector<128x128xf32>
    %c0_6 = arith.constant 0 : index
    %c0_7 = arith.constant 0 : index
    %9 = vector.load %arg7[%c0_6, %c0_7] : memref<128x128xf32, #tpu.memory_space<vmem>>, vector<128x128xf32>
    %c0_8 = arith.constant 0 : index
    %c0_9 = arith.constant 0 : index
    %10 = vector.load %arg5[%c0_8, %c0_9] : memref<128x128xbf16, #tpu.memory_space<vmem>>, vector<128x128xbf16>
    %11 = arith.truncf %8 : vector<128x128xf32> to vector<128x128xbf16>
    %cst_10 = arith.constant dense<0.000000e+00> : vector<128x128xf32>
    %12 = tpu.matmul %10, %11, %cst_10 {dimension_numbers = #tpu.dot_dimension_numbers<[1], [0], [0], [1], [0, 0, 1, 1], [], []>} : vector<128x128xbf16>, vector<128x128xbf16>, vector<128x128xf32> -> vector<128x128xf32>
    %13 = arith.addf %9, %12 : vector<128x128xf32>
    %c0_11 = arith.constant 0 : index
    %c0_12 = arith.constant 0 : index
    %14 = vector.load %arg7[%c0_11, %c0_12] : memref<128x128xf32, #tpu.memory_space<vmem>>, vector<128x128xf32>
    tpu.vector_store %arg7[%c0_11, %c0_12], %13 {strides = array<i32>} : memref<128x128xf32, #tpu.memory_space<vmem>>, vector<128x128xf32>,
    %15 = arith.cmpi eq, %arg1, %arg0 : i32
    %16 = arith.extui %15 : i1 to i32
    %c0_i32_13 = arith.constant 0 : i32
    %17 = arith.cmpi ne, %16, %c0_i32_13 : i32
    scf.if %17 {
      %c0_15 = arith.constant 0 : index
      %c0_16 = arith.constant 0 : index
      %21 = vector.load %arg7[%c0_15, %c0_16] : memref<128x128xf32, #tpu.memory_space<vmem>>, vector<128x128xf32>
      %22 = arith.addf %21, %8 : vector<128x128xf32>
      %c0_17 = arith.constant 0 : index
      %c0_18 = arith.constant 0 : index
      %23 = vector.load %arg7[%c0_17, %c0_18] : memref<128x128xf32, #tpu.memory_space<vmem>>, vector<128x128xf32>
      tpu.vector_store %arg7[%c0_17, %c0_18], %22 {strides = array<i32>} : memref<128x128xf32, #tpu.memory_space<vmem>>, vector<128x128xf32>,
    } else {
    }
    %c1_i32 = arith.constant 1 : i32
    %18 = arith.cmpi eq, %arg1, %c1_i32 : i32
    %19 = arith.extui %18 : i1 to i32
    %c0_i32_14 = arith.constant 0 : i32
    %20 = arith.cmpi ne, %19, %c0_i32_14 : i32
    scf.if %20 {
      %c0_15 = arith.constant 0 : index
      %c0_16 = arith.constant 0 : index
      %21 = vector.load %arg7[%c0_15, %c0_16] : memref<128x128xf32, #tpu.memory_space<vmem>>, vector<128x128xf32>
      %c0_17 = arith.constant 0 : index
      %c0_18 = arith.constant 0 : index
      %22 = vector.load %arg6[%c0_17, %c0_18] : memref<128x128xf32, #tpu.memory_space<vmem>>, vector<128x128xf32>
      tpu.vector_store %arg6[%c0_17, %c0_18], %21 {strides = array<i32>} : memref<128x128xf32, #tpu.memory_space<vmem>>, vector<128x128xf32>,
    } else {
    }
    return
  }
  func.func @transform_0(%arg0: i32, %arg1: i32) -> (i32, i32) {
    %c0_i32 = arith.constant 0 : i32
    %c0_i32_0 = arith.constant 0 : i32
    return %arg1, %c0_i32 : i32, i32
  }
  func.func @transform_1(%arg0: i32, %arg1: i32) -> (i32, i32) {
    %c0_i32 = arith.constant 0 : i32
    %c0_i32_0 = arith.constant 0 : i32
    %c0_i32_1 = arith.constant 0 : i32
    return %c0_i32, %c0_i32_0 : i32, i32
  }
  func.func @transform_2(%arg0: i32, %arg1: i32) -> (i32, i32) {
    %c0_i32 = arith.constant 0 : i32
    %c0_i32_0 = arith.constant 0 : i32
    %c0_i32_1 = arith.constant 0 : i32
    return %c0_i32, %c0_i32_0 : i32, i32
  }
  func.func @transform_3(%arg0: i32, %arg1: i32) -> (i32, i32) {
    %c0_i32 = arith.constant 0 : i32
    return %arg0, %arg1 : i32, i32
  }
  func.func @transform_4(%arg0: i32, %arg1: i32) -> (i32, i32) {
    %c0_i32 = arith.constant 0 : i32
    %c0_i32_0 = arith.constant 0 : i32
    return %arg0, %c0_i32 : i32, i32
  }
}

</mosaic_0001>

<llo_original>
// kernel: tpu_custom_call.1
$region0: #{tpu_custom_call.1}
  #allocation0 [shape = 'u32[]', space=smem, size = 0x4, offset = 0x4, fixed_abs, tag = 'smem constant byte address 0x4 - core index']
  #allocation1 [shape = 'u32[144,128]{1,0:T(1,128)}', space=vmem, size = 0x12000, scoped, tag = 'internal scratch']
  #allocation2 [shape = 'f32[128,128]{1,0:T(8,128)}', space=vmem, size = 0x10000, scoped, tag = 'scratch operand']
  %s0 = inlined_call_operand.vmem [shape: f32[256,8], index: 0, kind: input, shape index: {}]
  %s1 = inlined_call_operand.vmem [shape: f32[8,128], index: 1, kind: input, shape index: {}]
  %s2 = inlined_call_operand.vmem [shape: f32[1,128], index: 2, kind: input, shape index: {}]
  %s3 = inlined_call_operand.vmem [shape: bf16[256,256], index: 3, kind: input, shape index: {}]
  %s4 = inlined_call_operand.hbm [shape: f32[256,128], index: 4, kind: output, shape index: {}]
  %s5 = sld [smem:[#allocation0]]
  $region102: #{tpu_custom_call.1} parent=0
    _
  %s7 = ssub.s32 1, %s5
  %s8 = scalar_select 0, %s7, %s5
  $region1: #{tpu_custom_call.1} parent=0
    #allocation3 [shape = 'u8[65536]{0}', space=vmem, size = 0x10000, scoped, tag = 'input window, operand 3']
    #allocation4 [shape = 'u8[131072]{0}', space=vmem, size = 0x20000, scoped, tag = 'output window, operand 0']
    #allocation5 [shape = 's32[2]{0}', space=sflag, size = 0x8, scoped, tag = 'scoped memory for tpu_custom_call.1']
    %9 = vsyncpa [#allocation5], 0
    %s10 = scalar_lea.sflag [#allocation5], 1
    %11 = vsyncpa %s10, 0
    loop: start=0, step=1, limit=6
    $region2: #{tpu_custom_call.1} parent=1 // loop_pre_header
      _
    $region3: #{tpu_custom_call.1} parent=1 // loop_header
      %s13 = sphi 0, %s17
      %p14 = scmp.ge.s32.totalorder %s13, 6
      %s20 = sphi 0, %s32
      %s21 = sphi 0, %s28
      %s22 = sphi 0, %s20
      %s23 = sphi 0, %s21
      %s24 = sphi 0, %s22
      %s25 = sphi 0, %s23
      %s35 = sphi 0, %s37
      %s38 = sphi 0, %s35
      %s39 = sphi 0, %s38
      %s55 = sphi 0, %s39
      %s59 = sphi 0, %s59
      %s61 = sphi 0, %s59
      %s62 = sphi 0, %s61
      %s76 = sphi 0, %s62
      %s80 = sphi 0, %s80
      %s82 = sphi 0, %s80
      %s83 = sphi 0, %s82
      %s97 = sphi 0, %s83
      %s105 = sphi 0, %s107
      %s108 = sphi 0, %s105
      %s109 = sphi 0, %s108
      %s125 = sphi 0, %s109
      %s131 = sphi 0, %s133
      %s134 = sphi 0, %s131
      %s135 = sphi 0, %s134
      %s151 = sphi 0, %s135
    $region4: #{tpu_custom_call.1} parent=1 // loop_header_branch
      %16 = sbr.rel (%p14) target = $region8
    $region5: #{tpu_custom_call.1} parent=1 // loop_body
      %s18 = ssub.s32 %s13, 1
      %s19 = ssub.s32 %s13, 2
      %s26 = sadd.s32 1, %s21
      %p27 = scmp.ge.s32.totalorder %s26, 2
      %s28 = scalar_select %p27, 0, %s26
      %s29 = sadd.s32 1, %s20
      %s30 = scalar_select %p27, %s29, %s20
      %p31 = scmp.ge.s32.totalorder %s30, 2
      %s32 = scalar_select %p31, 0, %s30
      %s33 = ssub.s32 %s21, %s28
      %p34 = scmp.eq.s32.totalorder %s33, 0
      %s36 = sadd.s32 %s35, 1
      %s37 = scalar_select %p34, %s35, %s36
      %p40 = pneg %p34
      %p41 = scmp.eq.s32.totalorder %s13, 3
      %p42 = por %p40, %p41
      %p43 = scmp.ne.s32.totalorder %s35, %s38
      %p44 = scmp.eq.s32.totalorder %s13, 0
      %p45 = por %p43, %p44
      %p46 = scmp.ne.s32.totalorder %s35, %s38
      %p47 = scmp.eq.s32.totalorder %s18, 3
      %p48 = por %p46, %p47
      %p49 = scmp.ne.s32.totalorder %s38, %s39
      %p50 = scmp.eq.s32.totalorder %s18, 0
      %p51 = por %p49, %p50
      %p52 = scmp.ne.s32.totalorder %s38, %s39
      %p53 = scmp.eq.s32.totalorder %s19, 3
      %p54 = por %p52, %p53
      %p56 = scmp.ne.s32.totalorder %s39, %s55
      %p57 = scmp.eq.s32.totalorder %s19, 0
      %p58 = por %p56, %p57
      %s60 = sadd.s32 %s59, 1
      %p63 = scmp.eq.s32.totalorder %s13, 3
      %p64 = scmp.ne.s32.totalorder %s59, %s61
      %p65 = scmp.eq.s32.totalorder %s13, 0
      %p66 = por %p64, %p65
      %p67 = scmp.ne.s32.totalorder %s59, %s61
      %p68 = scmp.eq.s32.totalorder %s18, 3
      %p69 = por %p67, %p68
      %p70 = scmp.ne.s32.totalorder %s61, %s62
      %p71 = scmp.eq.s32.totalorder %s18, 0
      %p72 = por %p70, %p71
      %p73 = scmp.ne.s32.totalorder %s61, %s62
      %p74 = scmp.eq.s32.totalorder %s19, 3
      %p75 = por %p73, %p74
      %p77 = scmp.ne.s32.totalorder %s62, %s76
      %p78 = scmp.eq.s32.totalorder %s19, 0
      %p79 = por %p77, %p78
      %s81 = sadd.s32 %s80, 1
      %p84 = scmp.eq.s32.totalorder %s13, 3
      %p85 = scmp.ne.s32.totalorder %s80, %s82
      %p86 = scmp.eq.s32.totalorder %s13, 0
      %p87 = por %p85, %p86
      %p88 = scmp.ne.s32.totalorder %s80, %s82
      %p89 = scmp.eq.s32.totalorder %s18, 3
      %p90 = por %p88, %p89
      %p91 = scmp.ne.s32.totalorder %s82, %s83
      %p92 = scmp.eq.s32.totalorder %s18, 0
      %p93 = por %p91, %p92
      %p94 = scmp.ne.s32.totalorder %s82, %s83
      %p95 = scmp.eq.s32.totalorder %s19, 3
      %p96 = por %p94, %p95
      %p98 = scmp.ne.s32.totalorder %s83, %s97
      %p99 = scmp.eq.s32.totalorder %s19, 0
      %p100 = por %p98, %p99
      %s101 = ssub.s32 %s20, %s32
      %s102 = ssub.s32 %s21, %s28
      %s103 = sor.u32 %s101, %s102
      %p104 = scmp.eq.s32.totalorder %s103, 0
      %s106 = sadd.s32 %s105, 1
      %s107 = scalar_select %p104, %s105, %s106
      %p110 = pneg %p104
      %p111 = scmp.eq.s32.totalorder %s13, 3
      %p112 = por %p110, %p111
      %p113 = scmp.ne.s32.totalorder %s105, %s108
      %p114 = scmp.eq.s32.totalorder %s13, 0
      %p115 = por %p113, %p114
      %p116 = scmp.ne.s32.totalorder %s105, %s108
      %p117 = scmp.eq.s32.totalorder %s18, 3
      %p118 = por %p116, %p117
      %p119 = scmp.ne.s32.totalorder %s108, %s109
      %p120 = scmp.eq.s32.totalorder %s18, 0
      %p121 = por %p119, %p120
      %p122 = scmp.ne.s32.totalorder %s108, %s109
      %p123 = scmp.eq.s32.totalorder %s19, 3
      %p124 = por %p122, %p123
      %p126 = scmp.ne.s32.totalorder %s109, %s125
      %p127 = scmp.eq.s32.totalorder %s19, 0
      %p128 = por %p126, %p127
      %s129 = ssub.s32 %s20, %s32
      %p130 = scmp.eq.s32.totalorder %s129, 0
      %s132 = sadd.s32 %s131, 1
      %s133 = scalar_select %p130, %s131, %s132
      %p136 = pneg %p130
      %p137 = scmp.eq.s32.totalorder %s13, 3
      %p138 = por %p136, %p137
      %p139 = scmp.ne.s32.totalorder %s131, %s134
      %p140 = scmp.eq.s32.totalorder %s13, 0
      %p141 = por %p139, %p140
      %p142 = scmp.ne.s32.totalorder %s131, %s134
      %p143 = scmp.eq.s32.totalorder %s18, 3
      %p144 = por %p142, %p143
      %p145 = scmp.ne.s32.totalorder %s134, %s135
      %p146 = scmp.eq.s32.totalorder %s18, 0
      %p147 = por %p145, %p146
      %p148 = scmp.ne.s32.totalorder %s134, %s135
      %p149 = scmp.eq.s32.totalorder %s19, 3
      %p150 = por %p148, %p149
      %p152 = scmp.ne.s32.totalorder %s135, %s151
      %p153 = scmp.eq.s32.totalorder %s19, 0
      %p154 = por %p152, %p153
      %p155 = scmp.le.s32.totalorder 1, %s13
      %p156 = scmp.lt.s32.totalorder %s13, 5
      %p157 = pnand %p155, %p156
      %p158 = pneg %p157
      // Predicated region
      $region9: #{tpu_custom_call.1} parent=5 // pred_check
        _
      $region10: #{tpu_custom_call.1} parent=5 // pred_check_branch
        %160 = sbr.rel (%p157) target = $region12
      $region11: #{tpu_custom_call.1} parent=5 // pred_region
        %s161 = ssub.s32 %s13, 1
        // Predicated region
        $region13: #{tpu_custom_call.1} parent=11 // pred_check
          %p162 = pneg %p72
        $region14: #{tpu_custom_call.1} parent=11 // pred_check_branch
          %164 = sbr.rel (%p162) target = $region16
        $region15: #{tpu_custom_call.1} parent=11 // pred_region
          _
        $region16: #{tpu_custom_call.1} parent=11 // pred_fallthru
          _
        // Predicated region
        $region17: #{tpu_custom_call.1} parent=11 // pred_check
          %p165 = pneg %p93
        $region18: #{tpu_custom_call.1} parent=11 // pred_check_branch
          %167 = sbr.rel (%p165) target = $region20
        $region19: #{tpu_custom_call.1} parent=11 // pred_region
          _
        $region20: #{tpu_custom_call.1} parent=11 // pred_fallthru
          _
      $region12: #{tpu_custom_call.1} parent=5 // pred_fallthru
        _
      %p168 = scmp.lt.s32.totalorder %s13, 4
      // Predicated region
      $region21: #{tpu_custom_call.1} parent=5 // pred_check
        %p169 = pneg %p168
      $region22: #{tpu_custom_call.1} parent=5 // pred_check_branch
        %171 = sbr.rel (%p169) target = $region24
      $region23: #{tpu_custom_call.1} parent=5 // pred_region
        // Predicated region
        $region25: #{tpu_custom_call.1} parent=23 // pred_check
          %p172 = pneg %p45
        $region26: #{tpu_custom_call.1} parent=23 // pred_check_branch
          %174 = sbr.rel (%p172) target = $region28
        $region27: #{tpu_custom_call.1} parent=23 // pred_region
          %s175 = smul.u32 16, %s21
          %p176 = scmp.lt.s32.totalorder %s175, 31
          %s177 = scalar_select %p176, %s175, 31
          %s178 = smul.addr %s177, 8
          %s179 = scalar_lea.vmem %s0, %s178
          %s180 = smul.u32 16, %s21
        $region28: #{tpu_custom_call.1} parent=23 // pred_fallthru
          _
        // Predicated region
        $region29: #{tpu_custom_call.1} parent=23 // pred_check
          %p181 = pneg %p115
        $region30: #{tpu_custom_call.1} parent=23 // pred_check_branch
          %183 = sbr.rel (%p181) target = $region32
        $region31: #{tpu_custom_call.1} parent=23 // pred_region
          %s184 = sand.u32 %s105, 1
          %s185 = sand.u32 %s105, 1
          %s186 = smul.addr %s185, 64
          %s187 = scalar_lea.vmem [#allocation3], %s186
          %s188 = smul.u32 16, %s20
          %s189 = smul.addr %s188, 2
          %s190 = sadd.s32 %s21, %s189
          %s191 = smul.addr %s190, 4
          %s192 = scalar_lea.vmem %s3, %s191
          // Predicated region
          $region33: #{tpu_custom_call.1} parent=31 // pred_check
            _
          $region34: #{tpu_custom_call.1} parent=31 // pred_check_branch
            %194 = sbr.rel (0) target = $region36
          $region35: #{tpu_custom_call.1} parent=31 // pred_region
            // Predicated region
            $region37: #{tpu_custom_call.1} parent=35 // pred_check
              _
            $region38: #{tpu_custom_call.1} parent=35 // pred_check_branch
              %196 = sbr.rel target = $region40
            $region39: #{tpu_custom_call.1} parent=35 // pred_region
              // Predicated region
              $region52: #{tpu_custom_call.1} parent=39 // pred_check
                _
              $region53: #{tpu_custom_call.1} parent=39 // pred_check_branch
                %241 = sbr.rel (0) target = $region55
              $region54: #{tpu_custom_call.1} parent=39 // pred_region
                loop: start=0, step=1, limit=1
                $region56: #{tpu_custom_call.1} parent=54 // loop_pre_header
                  _
                $region57: #{tpu_custom_call.1} parent=54 // loop_header
                  %s243 = sphi 0, %s247
                  %p244 = scmp.ge.s32.totalorder %s243, 1
                  %s248 = sphi %s192, %s192
                  %s249 = sphi %s187, %s187
                $region58: #{tpu_custom_call.1} parent=54 // loop_header_branch
                  %246 = sbr.rel (%p244) target = $region62
                $region59: #{tpu_custom_call.1} parent=54 // loop_body
                  _
                $region60: #{tpu_custom_call.1} parent=54 // loop_footer
                  %s247 = sadd.s32 1, %s243
                $region61: #{tpu_custom_call.1} parent=54 // loop_footer_branch
                  %242 = sbr.rel target = $region57
                $region62: #{tpu_custom_call.1} parent=54 // loop_exit
                  _
                loop: start=0, step=1, limit=1
                $region63: #{tpu_custom_call.1} parent=54 // loop_pre_header
                  _
                $region64: #{tpu_custom_call.1} parent=54 // loop_header
                  %s252 = sphi 0, %s256
                  %p253 = scmp.ge.s32.totalorder %s252, 1
                  %s257 = sphi %s192, %s192
                  %s258 = sphi %s187, %s187
                $region65: #{tpu_custom_call.1} parent=54 // loop_header_branch
                  %255 = sbr.rel (%p253) target = $region69
                $region66: #{tpu_custom_call.1} parent=54 // loop_body
                  %v259 = vld [vmem:[%s257] sm:$0xf]
                  %260 = vst [vmem:[%s258] sm:$0xf] %v259
                  %v261 = vld [vmem:[%s257 + $0x8] sm:$0xf]
                  %262 = vst [vmem:[%s258 + $0x4] sm:$0xf] %v261
                  %v263 = vld [vmem:[%s257 + $0x10] sm:$0xf]
                  %264 = vst [vmem:[%s258 + $0x8] sm:$0xf] %v263
                  %v265 = vld [vmem:[%s257 + $0x18] sm:$0xf]
                  %266 = vst [vmem:[%s258 + $0xc] sm:$0xf] %v265
                  %v267 = vld [vmem:[%s257 + $0x20] sm:$0xf]
                  %268 = vst [vmem:[%s258 + $0x10] sm:$0xf] %v267
                  %v269 = vld [vmem:[%s257 + $0x28] sm:$0xf]
                  %270 = vst [vmem:[%s258 + $0x14] sm:$0xf] %v269
                  %v271 = vld [vmem:[%s257 + $0x30] sm:$0xf]
                  %272 = vst [vmem:[%s258 + $0x18] sm:$0xf] %v271
                  %v273 = vld [vmem:[%s257 + $0x38] sm:$0xf]
                  %274 = vst [vmem:[%s258 + $0x1c] sm:$0xf] %v273
                  %v275 = vld [vmem:[%s257 + $0x40] sm:$0xf]
                  %276 = vst [vmem:[%s258 + $0x20] sm:$0xf] %v275
                  %v277 = vld [vmem:[%s257 + $0x48] sm:$0xf]
                  %278 = vst [vmem:[%s258 + $0x24] sm:$0xf] %v277
                  %v279 = vld [vmem:[%s257 + $0x50] sm:$0xf]
                  %280 = vst [vmem:[%s258 + $0x28] sm:$0xf] %v279
                  %v281 = vld [vmem:[%s257 + $0x58] sm:$0xf]
                  %282 = vst [vmem:[%s258 + $0x2c] sm:$0xf] %v281
                  %v283 = vld [vmem:[%s257 + $0x60] sm:$0xf]
                  %284 = vst [vmem:[%s258 + $0x30] sm:$0xf] %v283
                  %v285 = vld [vmem:[%s257 + $0x68] sm:$0xf]
                  %286 = vst [vmem:[%s258 + $0x34] sm:$0xf] %v285
                  %v287 = vld [vmem:[%s257 + $0x70] sm:$0xf]
                  %288 = vst [vmem:[%s258 + $0x38] sm:$0xf] %v287
                  %v289 = vld [vmem:[%s257 + $0x78] sm:$0xf]
                  %290 = vst [vmem:[%s258 + $0x3c] sm:$0xf] %v289
                $region67: #{tpu_custom_call.1} parent=54 // loop_footer
                  %s256 = sadd.s32 1, %s252
                $region68: #{tpu_custom_call.1} parent=54 // loop_footer_branch
                  %251 = sbr.rel target = $region64
                $region69: #{tpu_custom_call.1} parent=54 // loop_exit
                  _
              $region55: #{tpu_custom_call.1} parent=39 // pred_fallthru
                _
            $region40: #{tpu_custom_call.1} parent=35 // pred_fallthru
              _
            // Predicated region
            $region41: #{tpu_custom_call.1} parent=35 // pred_check
              _
            $region42: #{tpu_custom_call.1} parent=35 // pred_check_branch
              %198 = sbr.rel (0) target = $region44
            $region43: #{tpu_custom_call.1} parent=35 // pred_region
              loop: start=0, step=1, limit=1
              $region45: #{tpu_custom_call.1} parent=43 // loop_pre_header
                _
              $region46: #{tpu_custom_call.1} parent=43 // loop_header
                %s201 = sphi 0, %s205
                %p202 = scmp.ge.s32.totalorder %s201, 1
                %s206 = sphi %s192, %s192
                %s207 = sphi %s187, %s187
              $region47: #{tpu_custom_call.1} parent=43 // loop_header_branch
                %204 = sbr.rel (%p202) target = $region51
              $region48: #{tpu_custom_call.1} parent=43 // loop_body
                %v208 = vld [vmem:[%s206] sm:$0xf]
                %209 = vst [vmem:[%s207] sm:$0xf] %v208
                %v210 = vld [vmem:[%s206 + $0x8] sm:$0xf]
                %211 = vst [vmem:[%s207 + $0x4] sm:$0xf] %v210
                %v212 = vld [vmem:[%s206 + $0x10] sm:$0xf]
                %213 = vst [vmem:[%s207 + $0x8] sm:$0xf] %v212
                %v214 = vld [vmem:[%s206 + $0x18] sm:$0xf]
                %215 = vst [vmem:[%s207 + $0xc] sm:$0xf] %v214
                %v216 = vld [vmem:[%s206 + $0x20] sm:$0xf]
                %217 = vst [vmem:[%s207 + $0x10] sm:$0xf] %v216
                %v218 = vld [vmem:[%s206 + $0x28] sm:$0xf]
                %219 = vst [vmem:[%s207 + $0x14] sm:$0xf] %v218
                %v220 = vld [vmem:[%s206 + $0x30] sm:$0xf]
                %221 = vst [vmem:[%s207 + $0x18] sm:$0xf] %v220
                %v222 = vld [vmem:[%s206 + $0x38] sm:$0xf]
                %223 = vst [vmem:[%s207 + $0x1c] sm:$0xf] %v222
                %v224 = vld [vmem:[%s206 + $0x40] sm:$0xf]
                %225 = vst [vmem:[%s207 + $0x20] sm:$0xf] %v224
                %v226 = vld [vmem:[%s206 + $0x48] sm:$0xf]
                %227 = vst [vmem:[%s207 + $0x24] sm:$0xf] %v226
                %v228 = vld [vmem:[%s206 + $0x50] sm:$0xf]
                %229 = vst [vmem:[%s207 + $0x28] sm:$0xf] %v228
                %v230 = vld [vmem:[%s206 + $0x58] sm:$0xf]
                %231 = vst [vmem:[%s207 + $0x2c] sm:$0xf] %v230
                %v232 = vld [vmem:[%s206 + $0x60] sm:$0xf]
                %233 = vst [vmem:[%s207 + $0x30] sm:$0xf] %v232
                %v234 = vld [vmem:[%s206 + $0x68] sm:$0xf]
                %235 = vst [vmem:[%s207 + $0x34] sm:$0xf] %v234
                %v236 = vld [vmem:[%s206 + $0x70] sm:$0xf]
                %237 = vst [vmem:[%s207 + $0x38] sm:$0xf] %v236
                %v238 = vld [vmem:[%s206 + $0x78] sm:$0xf]
                %239 = vst [vmem:[%s207 + $0x3c] sm:$0xf] %v238
              $region49: #{tpu_custom_call.1} parent=43 // loop_footer
                %s205 = sadd.s32 1, %s201
              $region50: #{tpu_custom_call.1} parent=43 // loop_footer_branch
                %200 = sbr.rel target = $region46
              $region51: #{tpu_custom_call.1} parent=43 // loop_exit
                _
            $region44: #{tpu_custom_call.1} parent=35 // pred_fallthru
              _
          $region36: #{tpu_custom_call.1} parent=31 // pred_fallthru
            _
          %291 = vnop
        $region32: #{tpu_custom_call.1} parent=23 // pred_fallthru
          _
      $region24: #{tpu_custom_call.1} parent=5 // pred_fallthru
        _
      %p292 = scmp.le.s32.totalorder 1, %s13
      %p293 = scmp.lt.s32.totalorder %s13, 5
      %p294 = pnand %p292, %p293
      %p295 = pneg %p294
      // Predicated region
      $region70: #{tpu_custom_call.1} parent=5 // pred_check
        _
      $region71: #{tpu_custom_call.1} parent=5 // pred_check_branch
        %297 = sbr.rel (%p294) target = $region73
      $region72: #{tpu_custom_call.1} parent=5 // pred_region
        %s298 = ssub.s32 %s13, 1
        %s299 = sand.u32 %s108, 1
        %s300 = sand.u32 %s108, 1
        %s301 = smul.addr %s300, 64
        %s302 = scalar_lea.vmem [#allocation3], %s301
        // Predicated region
        $region74: #{tpu_custom_call.1} parent=72 // pred_check
          %p303 = pneg %p121
        $region75: #{tpu_custom_call.1} parent=72 // pred_check_branch
          %305 = sbr.rel (%p303) target = $region77
        $region76: #{tpu_custom_call.1} parent=72 // pred_region
          _
        $region77: #{tpu_custom_call.1} parent=72 // pred_fallthru
          _
        %s306 = smul.u32 16, %s23
        %p307 = scmp.lt.s32.totalorder %s306, 31
        %s308 = scalar_select %p307, %s306, 31
        %s309 = smul.addr %s308, 8
        %s310 = scalar_lea.vmem %s0, %s309
        %p311 = pneg %p51
        %p312 = pneg %p48
        %p313 = pneg %p72
        %p314 = pneg %p69
        %p315 = pneg %p93
        %p316 = pneg %p90
        %s317 = sand.u32 %s108, 1
        %s318 = sand.u32 %s108, 1
        %s319 = smul.addr %s318, 64
        %s320 = scalar_lea.vmem [#allocation3], %s319
        %p321 = pneg %p121
        %p322 = pneg %p118
        %p323 = pneg %p147
        %p324 = pneg %p144
        %s325 = sand.u32 %s134, 1
        %s326 = scalar_lea.sflag [#allocation5], %s325
        %s327 = sand.u32 %s134, 1
        %s328 = smul.addr %s327, 128
        %s329 = scalar_lea.vmem [#allocation4], %s328
        %s330 = smul.u32 16, %s23
        %p331 = scmp.lt.s32.totalorder %s330, 31
        %s332 = scalar_select %p331, %s330, 31
        %s333 = smul.addr %s332, 8
        %s334 = scalar_lea.vmem %s0, %s333
        %s335 = smul.u32 16, %s23
        %s336 = smul.u32 16, %s22
        %s337 = smul.u32 16, %s22
        %p339 = scmp.eq.s32.totalorder %s23, 0
        // Predicated region
        $region78: #{tpu_custom_call.1} parent=72 // pred_check
          %p340 = pneg %p339
        $region79: #{tpu_custom_call.1} parent=72 // pred_check_branch
          %342 = sbr.rel (%p340) target = $region81
        $region80: #{tpu_custom_call.1} parent=72 // pred_region
          %343 = vst [vmem:[#allocation2] sm:$0xff] 0.0
          %344 = vst [vmem:[#allocation2 + $0x8] sm:$0xff] 0.0
          %345 = vst [vmem:[#allocation2 + $0x10] sm:$0xff] 0.0
          %346 = vst [vmem:[#allocation2 + $0x18] sm:$0xff] 0.0
          %347 = vst [vmem:[#allocation2 + $0x20] sm:$0xff] 0.0
          %348 = vst [vmem:[#allocation2 + $0x28] sm:$0xff] 0.0
          %349 = vst [vmem:[#allocation2 + $0x30] sm:$0xff] 0.0
          %350 = vst [vmem:[#allocation2 + $0x38] sm:$0xff] 0.0
          %351 = vst [vmem:[#allocation2 + $0x40] sm:$0xff] 0.0
          %352 = vst [vmem:[#allocation2 + $0x48] sm:$0xff] 0.0
          %353 = vst [vmem:[#allocation2 + $0x50] sm:$0xff] 0.0
          %354 = vst [vmem:[#allocation2 + $0x58] sm:$0xff] 0.0
          %355 = vst [vmem:[#allocation2 + $0x60] sm:$0xff] 0.0
          %356 = vst [vmem:[#allocation2 + $0x68] sm:$0xff] 0.0
          %357 = vst [vmem:[#allocation2 + $0x70] sm:$0xff] 0.0
          %358 = vst [vmem:[#allocation2 + $0x78] sm:$0xff] 0.0
        $region81: #{tpu_custom_call.1} parent=72 // pred_fallthru
          _
        %v359 = vld [vmem:[%s334] sm:$0xff]
        %v360 = vld [vmem:[%s334 + $0x8] sm:$0xff]
        %v361 = vld [vmem:[%s334 + $0x10] sm:$0xff]
        %v362 = vld [vmem:[%s334 + $0x18] sm:$0xff]
        %v363 = vld [vmem:[%s334 + $0x20] sm:$0xff]
        %v364 = vld [vmem:[%s334 + $0x28] sm:$0xff]
        %v365 = vld [vmem:[%s334 + $0x30] sm:$0xff]
        %v366 = vld [vmem:[%s334 + $0x38] sm:$0xff]
        %v367 = vld [vmem:[%s334 + $0x40] sm:$0xff]
        %v368 = vld [vmem:[%s334 + $0x48] sm:$0xff]
        %v369 = vld [vmem:[%s334 + $0x50] sm:$0xff]
        %v370 = vld [vmem:[%s334 + $0x58] sm:$0xff]
        %v371 = vld [vmem:[%s334 + $0x60] sm:$0xff]
        %v372 = vld [vmem:[%s334 + $0x68] sm:$0xff]
        %v373 = vld [vmem:[%s334 + $0x70] sm:$0xff]
        %v374 = vld [vmem:[%s334 + $0x78] sm:$0xff]
        %v375 = vld [vmem:[%s1] sm:$0xff]
        %v376 = vld [vmem:[%s2] sm:$0x1]
        %v378 = vlaneseq
        %v379 = vshrl.u32 %v378, 7
        %v380 = vsub.s32 0, %v379
        %v381 = vrot.slane %v376, %v380
        %vm383 = vcmask 64512
        %v385 = vsel %vm383, %v359, 0
        %v388 = vsel %vm383, %v360, 0
        %v391 = vsel %vm383, %v361, 0
        %v394 = vsel %vm383, %v362, 0
        %v397 = vsel %vm383, %v363, 0
        %v400 = vsel %vm383, %v364, 0
        %v403 = vsel %vm383, %v365, 0
        %v406 = vsel %vm383, %v366, 0
        %v409 = vsel %vm383, %v367, 0
        %v412 = vsel %vm383, %v368, 0
        %v415 = vsel %vm383, %v369, 0
        %v418 = vsel %vm383, %v370, 0
        %v421 = vsel %vm383, %v371, 0
        %v424 = vsel %vm383, %v372, 0
        %v427 = vsel %vm383, %v373, 0
        %v430 = vsel %vm383, %v374, 0
        %432 = vmatprep.subr.mxu0 0.0
        %433 = vmatpush1.msra.mxu0 %v375
        %434 = vmatprep.subr.mxu0 0.0
        %435 = vmatpush1.msra.mxu0 0.0
        %436 = vmatprep.subr.mxu0 0.0
        %437 = vmatpush1.msra.mxu0 0.0
        %438 = vmatprep.subr.mxu0 0.0
        %439 = vmatpush1.msra.mxu0 0.0
        %440 = vmatprep.subr.mxu0 0.0
        %441 = vmatpush1.msra.mxu0 0.0
        %442 = vmatprep.subr.mxu0 0.0
        %443 = vmatpush1.msra.mxu0 0.0
        %444 = vmatprep.subr.mxu0 0.0
        %445 = vmatpush1.msra.mxu0 0.0
        %446 = vmatprep.subr.mxu0 0.0
        %447 = vmatpush1.msra.mxu0 0.0
        %448 = vmatprep.subr.mxu0 0.0
        %449 = vmatpush1.msra.mxu0 0.0
        %450 = vmatprep.subr.mxu0 0.0
        %451 = vmatpush1.msra.mxu0 0.0
        %452 = vmatprep.subr.mxu0 0.0
        %453 = vmatpush1.msra.mxu0 0.0
        %454 = vmatprep.subr.mxu0 0.0
        %455 = vmatpush1.msra.mxu0 0.0
        %456 = vmatprep.subr.mxu0 0.0
        %457 = vmatpush1.msra.mxu0 0.0
        %458 = vmatprep.subr.mxu0 0.0
        %459 = vmatpush1.msra.mxu0 0.0
        %460 = vmatprep.subr.mxu0 0.0
        %461 = vmatpush1.msra.mxu0 0.0
        %462 = vmatprep.subr.mxu0 0.0
        %463 = vmatpush1.msra.mxu0 0.0
        %464 = vmatprep.subr.mxu0 0.0
        %465 = vmatpush1.msra.mxu0 0.0
        %466 = vmatprep.subr.mxu0 0.0
        %467 = vmatpush1.msra.mxu0 0.0
        %468 = vmatprep.subr.mxu0 0.0
        %469 = vmatpush1.msra.mxu0 0.0
        %470 = vmatprep.subr.mxu0 0.0
        %471 = vmatpush1.msra.mxu0 0.0
        %472 = vmatprep.subr.mxu0 0.0
        %473 = vmatpush1.msra.mxu0 0.0
        %474 = vmatprep.subr.mxu0 0.0
        %475 = vmatpush1.msra.mxu0 0.0
        %476 = vmatprep.subr.mxu0 0.0
        %477 = vmatpush1.msra.mxu0 0.0
        %478 = vmatprep.subr.mxu0 0.0
        %479 = vmatpush1.msra.mxu0 0.0
        %480 = vmatprep.subr.mxu0 0.0
        %481 = vmatpush1.msra.mxu0 0.0
        %482 = vmatprep.subr.mxu0 0.0
        %483 = vmatpush1.msra.mxu0 0.0
        %484 = vmatprep.subr.mxu0 0.0
        %485 = vmatpush1.msra.mxu0 0.0
        %486 = vmatprep.subr.mxu0 0.0
        %487 = vmatpush1.msra.mxu0 0.0
        %488 = vmatprep.subr.mxu0 0.0
        %489 = vmatpush1.msra.mxu0 0.0
        %490 = vmatprep.subr.mxu0 0.0
        %491 = vmatpush1.msra.mxu0 0.0
        %492 = vmatprep.subr.mxu0 0.0
        %493 = vmatpush1.msra.mxu0 0.0
        %494 = vmatprep.subr.mxu0 0.0
        %495 = vmatpush1.msra.mxu0 0.0
        %496 = vmatprep.mubr.f32.mxu0 0.0
        %497 = vmatmul.mubr.f32.gmra.mrb[0].mxu0 %v385
        %v498 = vpop.f32.mrb[0].mxu0
        %v499 = vadd.f32 %v381, %v498
        %v500 = vpop.f32.mrb[0].mxu0
        %501 = vmatprep.mubr.f32.mxu0 0.0
        %502 = vmatmul.mubr.f32.gmra.mrb[0].mxu0 %v388
        %v503 = vpop.f32.mrb[0].mxu0
        %v504 = vadd.f32 %v381, %v503
        %v505 = vpop.f32.mrb[0].mxu0
        %506 = vmatprep.mubr.f32.mxu0 0.0
        %507 = vmatmul.mubr.f32.gmra.mrb[0].mxu0 %v391
        %v508 = vpop.f32.mrb[0].mxu0
        %v509 = vadd.f32 %v381, %v508
        %v510 = vpop.f32.mrb[0].mxu0
        %511 = vmatprep.mubr.f32.mxu0 0.0
        %512 = vmatmul.mubr.f32.gmra.mrb[0].mxu0 %v394
        %v513 = vpop.f32.mrb[0].mxu0
        %v514 = vadd.f32 %v381, %v513
        %v515 = vpop.f32.mrb[0].mxu0
        %516 = vmatprep.mubr.f32.mxu0 0.0
        %517 = vmatmul.mubr.f32.gmra.mrb[0].mxu0 %v397
        %v518 = vpop.f32.mrb[0].mxu0
        %v519 = vadd.f32 %v381, %v518
        %v520 = vpop.f32.mrb[0].mxu0
        %521 = vmatprep.mubr.f32.mxu0 0.0
        %522 = vmatmul.mubr.f32.gmra.mrb[0].mxu0 %v400
        %v523 = vpop.f32.mrb[0].mxu0
        %v524 = vadd.f32 %v381, %v523
        %v525 = vpop.f32.mrb[0].mxu0
        %526 = vmatprep.mubr.f32.mxu0 0.0
        %527 = vmatmul.mubr.f32.gmra.mrb[0].mxu0 %v403
        %v528 = vpop.f32.mrb[0].mxu0
        %v529 = vadd.f32 %v381, %v528
        %v530 = vpop.f32.mrb[0].mxu0
        %531 = vmatprep.mubr.f32.mxu0 0.0
        %532 = vmatmul.mubr.f32.gmra.mrb[0].mxu0 %v406
        %v533 = vpop.f32.mrb[0].mxu0
        %v534 = vadd.f32 %v381, %v533
        %v535 = vpop.f32.mrb[0].mxu0
        %536 = vmatprep.mubr.f32.mxu0 0.0
        %537 = vmatmul.mubr.f32.gmra.mrb[0].mxu0 %v409
        %v538 = vpop.f32.mrb[0].mxu0
        %v539 = vadd.f32 %v381, %v538
        %v540 = vpop.f32.mrb[0].mxu0
        %541 = vmatprep.mubr.f32.mxu0 0.0
        %542 = vmatmul.mubr.f32.gmra.mrb[0].mxu0 %v412
        %v543 = vpop.f32.mrb[0].mxu0
        %v544 = vadd.f32 %v381, %v543
        %v545 = vpop.f32.mrb[0].mxu0
        %546 = vmatprep.mubr.f32.mxu0 0.0
        %547 = vmatmul.mubr.f32.gmra.mrb[0].mxu0 %v415
        %v548 = vpop.f32.mrb[0].mxu0
        %v549 = vadd.f32 %v381, %v548
        %v550 = vpop.f32.mrb[0].mxu0
        %551 = vmatprep.mubr.f32.mxu0 0.0
        %552 = vmatmul.mubr.f32.gmra.mrb[0].mxu0 %v418
        %v553 = vpop.f32.mrb[0].mxu0
        %v554 = vadd.f32 %v381, %v553
        %v555 = vpop.f32.mrb[0].mxu0
        %556 = vmatprep.mubr.f32.mxu0 0.0
        %557 = vmatmul.mubr.f32.gmra.mrb[0].mxu0 %v421
        %v558 = vpop.f32.mrb[0].mxu0
        %v559 = vadd.f32 %v381, %v558
        %v560 = vpop.f32.mrb[0].mxu0
        %561 = vmatprep.mubr.f32.mxu0 0.0
        %562 = vmatmul.mubr.f32.gmra.mrb[0].mxu0 %v424
        %v563 = vpop.f32.mrb[0].mxu0
        %v564 = vadd.f32 %v381, %v563
        %v565 = vpop.f32.mrb[0].mxu0
        %566 = vmatprep.mubr.f32.mxu0 0.0
        %567 = vmatmul.mubr.f32.gmra.mrb[0].mxu0 %v427
        %v568 = vpop.f32.mrb[0].mxu0
        %v569 = vadd.f32 %v381, %v568
        %v570 = vpop.f32.mrb[0].mxu0
        %571 = vmatprep.mubr.f32.mxu0 0.0
        %572 = vmatmul.mubr.f32.gmra.mrb[0].mxu0 %v430
        %v573 = vpop.f32.mrb[0].mxu0
        %v574 = vadd.f32 %v381, %v573
        %v575 = vpop.f32.mrb[0].mxu0
        %576 = vdwg.mxu0
        %v577 = vld [vmem:[#allocation2] sm:$0xff]
        %v578 = vld [vmem:[#allocation2 + $0x8] sm:$0xff]
        %v579 = vld [vmem:[#allocation2 + $0x10] sm:$0xff]
        %v580 = vld [vmem:[#allocation2 + $0x18] sm:$0xff]
        %v581 = vld [vmem:[#allocation2 + $0x20] sm:$0xff]
        %v582 = vld [vmem:[#allocation2 + $0x28] sm:$0xff]
        %v583 = vld [vmem:[#allocation2 + $0x30] sm:$0xff]
        %v584 = vld [vmem:[#allocation2 + $0x38] sm:$0xff]
        %v585 = vld [vmem:[#allocation2 + $0x40] sm:$0xff]
        %v586 = vld [vmem:[#allocation2 + $0x48] sm:$0xff]
        %v587 = vld [vmem:[#allocation2 + $0x50] sm:$0xff]
        %v588 = vld [vmem:[#allocation2 + $0x58] sm:$0xff]
        %v589 = vld [vmem:[#allocation2 + $0x60] sm:$0xff]
        %v590 = vld [vmem:[#allocation2 + $0x68] sm:$0xff]
        %v591 = vld [vmem:[#allocation2 + $0x70] sm:$0xff]
        %v592 = vld [vmem:[#allocation2 + $0x78] sm:$0xff]
        %v593 = vld [vmem:[%s302] sm:$0xf]
        %v594 = vld [vmem:[%s302 + $0x4] sm:$0xf]
        %v595 = vld [vmem:[%s302 + $0x8] sm:$0xf]
        %v596 = vld [vmem:[%s302 + $0xc] sm:$0xf]
        %v597 = vld [vmem:[%s302 + $0x10] sm:$0xf]
        %v598 = vld [vmem:[%s302 + $0x14] sm:$0xf]
        %v599 = vld [vmem:[%s302 + $0x18] sm:$0xf]
        %v600 = vld [vmem:[%s302 + $0x1c] sm:$0xf]
        %v601 = vld [vmem:[%s302 + $0x20] sm:$0xf]
        %v602 = vld [vmem:[%s302 + $0x24] sm:$0xf]
        %v603 = vld [vmem:[%s302 + $0x28] sm:$0xf]
        %v604 = vld [vmem:[%s302 + $0x2c] sm:$0xf]
        %v605 = vld [vmem:[%s302 + $0x30] sm:$0xf]
        %v606 = vld [vmem:[%s302 + $0x34] sm:$0xf]
        %v607 = vld [vmem:[%s302 + $0x38] sm:$0xf]
        %v608 = vld [vmem:[%s302 + $0x3c] sm:$0xf]
        %v609 = vpack.c.bf16 %v504, %v499
        %v610 = vpack.c.bf16 %v514, %v509
        %v611 = vpack.c.bf16 %v524, %v519
        %v612 = vpack.c.bf16 %v534, %v529
        %v613 = vpack.c.bf16 %v544, %v539
        %v614 = vpack.c.bf16 %v554, %v549
        %v615 = vpack.c.bf16 %v564, %v559
        %v616 = vpack.c.bf16 %v574, %v569
        %v633 = vunpack.c.l.b16 %v593
        %v634 = vunpack.c.l.b16 %v594
        %v635 = vunpack.c.l.b16 %v595
        %v636 = vunpack.c.l.b16 %v596
        %v637 = vunpack.c.l.b16 %v597
        %v638 = vunpack.c.l.b16 %v598
        %v639 = vunpack.c.l.b16 %v599
        %v640 = vunpack.c.l.b16 %v600
        %v641 = vunpack.c.l.b16 %v601
        %v642 = vunpack.c.l.b16 %v602
        %v643 = vunpack.c.l.b16 %v603
        %v644 = vunpack.c.l.b16 %v604
        %v645 = vunpack.c.l.b16 %v605
        %v646 = vunpack.c.l.b16 %v606
        %v647 = vunpack.c.l.b16 %v607
        %v648 = vunpack.c.l.b16 %v608
        %v649 = vpack.c.b16 %v634, %v633
        %v650 = vpack.c.b16 %v636, %v635
        %v651 = vpack.c.b16 %v638, %v637
        %v652 = vpack.c.b16 %v640, %v639
        %v653 = vpack.c.b16 %v642, %v641
        %v654 = vpack.c.b16 %v644, %v643
        %v655 = vpack.c.b16 %v646, %v645
        %v656 = vpack.c.b16 %v648, %v647
        %665 = vmatprep.subr.bf16.mxu0 0
        %666 = vmatpush1.bf16.msra.mxu0 %v609
        %667 = vmatprep.subr.bf16.mxu0 0
        %668 = vmatpush1.bf16.msra.mxu0 %v610
        %669 = vmatprep.subr.bf16.mxu0 0
        %670 = vmatpush1.bf16.msra.mxu0 %v611
        %671 = vmatprep.subr.bf16.mxu0 0
        %672 = vmatpush1.bf16.msra.mxu0 %v612
        %673 = vmatprep.subr.bf16.mxu0 0
        %674 = vmatpush1.bf16.msra.mxu0 %v613
        %675 = vmatprep.subr.bf16.mxu0 0
        %676 = vmatpush1.bf16.msra.mxu0 %v614
        %677 = vmatprep.subr.bf16.mxu0 0
        %678 = vmatpush1.bf16.msra.mxu0 %v615
        %679 = vmatprep.subr.bf16.mxu0 0
        %680 = vmatpush1.bf16.msra.mxu0 %v616
        %681 = vmatprep.subr.bf16.mxu0 0
        %682 = vmatpush1.bf16.msra.mxu0 0
        %683 = vmatprep.subr.bf16.mxu0 0
        %684 = vmatpush1.bf16.msra.mxu0 0
        %685 = vmatprep.subr.bf16.mxu0 0
        %686 = vmatpush1.bf16.msra.mxu0 0
        %687 = vmatprep.subr.bf16.mxu0 0
        %688 = vmatpush1.bf16.msra.mxu0 0
        %689 = vmatprep.subr.bf16.mxu0 0
        %690 = vmatpush1.bf16.msra.mxu0 0
        %691 = vmatprep.subr.bf16.mxu0 0
        %692 = vmatpush1.bf16.msra.mxu0 0
        %693 = vmatprep.subr.bf16.mxu0 0
        %694 = vmatpush1.bf16.msra.mxu0 0
        %695 = vmatprep.subr.bf16.mxu0 0
        %696 = vmatpush1.bf16.msra.mxu0 0
        %697 = vmatprep.mubr.bf16.mxu0 0
        %698 = vmatmul.mubr.bf16.gmra.mrb[0].mxu0 %v649
        %v699 = vpop.f32.mrb[0].mxu0
        %v700 = vadd.f32 0.0, %v699
        %v701 = vpop.f32.mrb[0].mxu0
        %v702 = vpop.f32.mrb[0].mxu0
        %v703 = vadd.f32 0.0, %v702
        %v704 = vpop.f32.mrb[0].mxu0
        %705 = vmatprep.mubr.bf16.mxu0 0
        %706 = vmatmul.mubr.bf16.gmra.mrb[0].mxu0 %v650
        %v707 = vpop.f32.mrb[0].mxu0
        %v708 = vadd.f32 0.0, %v707
        %v709 = vpop.f32.mrb[0].mxu0
        %v710 = vpop.f32.mrb[0].mxu0
        %v711 = vadd.f32 0.0, %v710
        %v712 = vpop.f32.mrb[0].mxu0
        %713 = vmatprep.mubr.bf16.mxu0 0
        %714 = vmatmul.mubr.bf16.gmra.mrb[0].mxu0 %v651
        %v715 = vpop.f32.mrb[0].mxu0
        %v716 = vadd.f32 0.0, %v715
        %v717 = vpop.f32.mrb[0].mxu0
        %v718 = vpop.f32.mrb[0].mxu0
        %v719 = vadd.f32 0.0, %v718
        %v720 = vpop.f32.mrb[0].mxu0
        %721 = vmatprep.mubr.bf16.mxu0 0
        %722 = vmatmul.mubr.bf16.gmra.mrb[0].mxu0 %v652
        %v723 = vpop.f32.mrb[0].mxu0
        %v724 = vadd.f32 0.0, %v723
        %v725 = vpop.f32.mrb[0].mxu0
        %v726 = vpop.f32.mrb[0].mxu0
        %v727 = vadd.f32 0.0, %v726
        %v728 = vpop.f32.mrb[0].mxu0
        %729 = vmatprep.mubr.bf16.mxu0 0
        %730 = vmatmul.mubr.bf16.gmra.mrb[0].mxu0 %v653
        %v731 = vpop.f32.mrb[0].mxu0
        %v732 = vadd.f32 0.0, %v731
        %v733 = vpop.f32.mrb[0].mxu0
        %v734 = vpop.f32.mrb[0].mxu0
        %v735 = vadd.f32 0.0, %v734
        %v736 = vpop.f32.mrb[0].mxu0
        %737 = vmatprep.mubr.bf16.mxu0 0
        %738 = vmatmul.mubr.bf16.gmra.mrb[0].mxu0 %v654
        %v739 = vpop.f32.mrb[0].mxu0
        %v740 = vadd.f32 0.0, %v739
        %v741 = vpop.f32.mrb[0].mxu0
        %v742 = vpop.f32.mrb[0].mxu0
        %v743 = vadd.f32 0.0, %v742
        %v744 = vpop.f32.mrb[0].mxu0
        %745 = vmatprep.mubr.bf16.mxu0 0
        %746 = vmatmul.mubr.bf16.gmra.mrb[0].mxu0 %v655
        %v747 = vpop.f32.mrb[0].mxu0
        %v748 = vadd.f32 0.0, %v747
        %v749 = vpop.f32.mrb[0].mxu0
        %v750 = vpop.f32.mrb[0].mxu0
        %v751 = vadd.f32 0.0, %v750
        %v752 = vpop.f32.mrb[0].mxu0
        %753 = vmatprep.mubr.bf16.mxu0 0
        %754 = vmatmul.mubr.bf16.gmra.mrb[0].mxu0 %v656
        %v755 = vpop.f32.mrb[0].mxu0
        %v756 = vadd.f32 0.0, %v755
        %v757 = vpop.f32.mrb[0].mxu0
        %v758 = vpop.f32.mrb[0].mxu0
        %v759 = vadd.f32 0.0, %v758
        %v760 = vpop.f32.mrb[0].mxu0
        %761 = vdwg.mxu0
        %v762 = vadd.f32 %v577, %v700
        %v763 = vadd.f32 %v578, %v703
        %v764 = vadd.f32 %v579, %v708
        %v765 = vadd.f32 %v580, %v711
        %v766 = vadd.f32 %v581, %v716
        %v767 = vadd.f32 %v582, %v719
        %v768 = vadd.f32 %v583, %v724
        %v769 = vadd.f32 %v584, %v727
        %v770 = vadd.f32 %v585, %v732
        %v771 = vadd.f32 %v586, %v735
        %v772 = vadd.f32 %v587, %v740
        %v773 = vadd.f32 %v588, %v743
        %v774 = vadd.f32 %v589, %v748
        %v775 = vadd.f32 %v590, %v751
        %v776 = vadd.f32 %v591, %v756
        %v777 = vadd.f32 %v592, %v759
        %778 = vst [vmem:[#allocation2] sm:$0xff] %v762
        %779 = vst [vmem:[#allocation2 + $0x8] sm:$0xff] %v763
        %780 = vst [vmem:[#allocation2 + $0x10] sm:$0xff] %v764
        %781 = vst [vmem:[#allocation2 + $0x18] sm:$0xff] %v765
        %782 = vst [vmem:[#allocation2 + $0x20] sm:$0xff] %v766
        %783 = vst [vmem:[#allocation2 + $0x28] sm:$0xff] %v767
        %784 = vst [vmem:[#allocation2 + $0x30] sm:$0xff] %v768
        %785 = vst [vmem:[#allocation2 + $0x38] sm:$0xff] %v769
        %786 = vst [vmem:[#allocation2 + $0x40] sm:$0xff] %v770
        %787 = vst [vmem:[#allocation2 + $0x48] sm:$0xff] %v771
        %788 = vst [vmem:[#allocation2 + $0x50] sm:$0xff] %v772
        %789 = vst [vmem:[#allocation2 + $0x58] sm:$0xff] %v773
        %790 = vst [vmem:[#allocation2 + $0x60] sm:$0xff] %v774
        %791 = vst [vmem:[#allocation2 + $0x68] sm:$0xff] %v775
        %792 = vst [vmem:[#allocation2 + $0x70] sm:$0xff] %v776
        %793 = vst [vmem:[#allocation2 + $0x78] sm:$0xff] %v777
        %p794 = scmp.eq.s32.totalorder %s23, %s22
        // Predicated region
        $region82: #{tpu_custom_call.1} parent=72 // pred_check
          %p795 = pneg %p794
        $region83: #{tpu_custom_call.1} parent=72 // pred_check_branch
          %797 = sbr.rel (%p795) target = $region85
        $region84: #{tpu_custom_call.1} parent=72 // pred_region
          %v798 = vld [vmem:[#allocation2] sm:$0xff]
          %v799 = vld [vmem:[#allocation2 + $0x8] sm:$0xff]
          %v800 = vld [vmem:[#allocation2 + $0x10] sm:$0xff]
          %v801 = vld [vmem:[#allocation2 + $0x18] sm:$0xff]
          %v802 = vld [vmem:[#allocation2 + $0x20] sm:$0xff]
          %v803 = vld [vmem:[#allocation2 + $0x28] sm:$0xff]
          %v804 = vld [vmem:[#allocation2 + $0x30] sm:$0xff]
          %v805 = vld [vmem:[#allocation2 + $0x38] sm:$0xff]
          %v806 = vld [vmem:[#allocation2 + $0x40] sm:$0xff]
          %v807 = vld [vmem:[#allocation2 + $0x48] sm:$0xff]
          %v808 = vld [vmem:[#allocation2 + $0x50] sm:$0xff]
          %v809 = vld [vmem:[#allocation2 + $0x58] sm:$0xff]
          %v810 = vld [vmem:[#allocation2 + $0x60] sm:$0xff]
          %v811 = vld [vmem:[#allocation2 + $0x68] sm:$0xff]
          %v812 = vld [vmem:[#allocation2 + $0x70] sm:$0xff]
          %v813 = vld [vmem:[#allocation2 + $0x78] sm:$0xff]
          %v814 = vadd.f32 %v798, %v499
          %v815 = vadd.f32 %v799, %v504
          %v816 = vadd.f32 %v800, %v509
          %v817 = vadd.f32 %v801, %v514
          %v818 = vadd.f32 %v802, %v519
          %v819 = vadd.f32 %v803, %v524
          %v820 = vadd.f32 %v804, %v529
          %v821 = vadd.f32 %v805, %v534
          %v822 = vadd.f32 %v806, %v539
          %v823 = vadd.f32 %v807, %v544
          %v824 = vadd.f32 %v808, %v549
          %v825 = vadd.f32 %v809, %v554
          %v826 = vadd.f32 %v810, %v559
          %v827 = vadd.f32 %v811, %v564
          %v828 = vadd.f32 %v812, %v569
          %v829 = vadd.f32 %v813, %v574
          %830 = vst [vmem:[#allocation2] sm:$0xff] %v814
          %831 = vst [vmem:[#allocation2 + $0x8] sm:$0xff] %v815
          %832 = vst [vmem:[#allocation2 + $0x10] sm:$0xff] %v816
          %833 = vst [vmem:[#allocation2 + $0x18] sm:$0xff] %v817
          %834 = vst [vmem:[#allocation2 + $0x20] sm:$0xff] %v818
          %835 = vst [vmem:[#allocation2 + $0x28] sm:$0xff] %v819
          %836 = vst [vmem:[#allocation2 + $0x30] sm:$0xff] %v820
          %837 = vst [vmem:[#allocation2 + $0x38] sm:$0xff] %v821
          %838 = vst [vmem:[#allocation2 + $0x40] sm:$0xff] %v822
          %839 = vst [vmem:[#allocation2 + $0x48] sm:$0xff] %v823
          %840 = vst [vmem:[#allocation2 + $0x50] sm:$0xff] %v824
          %841 = vst [vmem:[#allocation2 + $0x58] sm:$0xff] %v825
          %842 = vst [vmem:[#allocation2 + $0x60] sm:$0xff] %v826
          %843 = vst [vmem:[#allocation2 + $0x68] sm:$0xff] %v827
          %844 = vst [vmem:[#allocation2 + $0x70] sm:$0xff] %v828
          %845 = vst [vmem:[#allocation2 + $0x78] sm:$0xff] %v829
        $region85: #{tpu_custom_call.1} parent=72 // pred_fallthru
          _
        %p846 = scmp.eq.s32.totalorder %s23, 1
        // Predicated region
        $region86: #{tpu_custom_call.1} parent=72 // pred_check
          %p847 = pneg %p846
        $region87: #{tpu_custom_call.1} parent=72 // pred_check_branch
          %849 = sbr.rel (%p847) target = $region89
        $region88: #{tpu_custom_call.1} parent=72 // pred_region
          %v850 = vld [vmem:[#allocation2] sm:$0xff]
          %v851 = vld [vmem:[#allocation2 + $0x8] sm:$0xff]
          %v852 = vld [vmem:[#allocation2 + $0x10] sm:$0xff]
          %v853 = vld [vmem:[#allocation2 + $0x18] sm:$0xff]
          %v854 = vld [vmem:[#allocation2 + $0x20] sm:$0xff]
          %v855 = vld [vmem:[#allocation2 + $0x28] sm:$0xff]
          %v856 = vld [vmem:[#allocation2 + $0x30] sm:$0xff]
          %v857 = vld [vmem:[#allocation2 + $0x38] sm:$0xff]
          %v858 = vld [vmem:[#allocation2 + $0x40] sm:$0xff]
          %v859 = vld [vmem:[#allocation2 + $0x48] sm:$0xff]
          %v860 = vld [vmem:[#allocation2 + $0x50] sm:$0xff]
          %v861 = vld [vmem:[#allocation2 + $0x58] sm:$0xff]
          %v862 = vld [vmem:[#allocation2 + $0x60] sm:$0xff]
          %v863 = vld [vmem:[#allocation2 + $0x68] sm:$0xff]
          %v864 = vld [vmem:[#allocation2 + $0x70] sm:$0xff]
          %v865 = vld [vmem:[#allocation2 + $0x78] sm:$0xff]
          %866 = vst [vmem:[%s329] sm:$0xff] %v850
          %867 = vst [vmem:[%s329 + $0x8] sm:$0xff] %v851
          %868 = vst [vmem:[%s329 + $0x10] sm:$0xff] %v852
          %869 = vst [vmem:[%s329 + $0x18] sm:$0xff] %v853
          %870 = vst [vmem:[%s329 + $0x20] sm:$0xff] %v854
          %871 = vst [vmem:[%s329 + $0x28] sm:$0xff] %v855
          %872 = vst [vmem:[%s329 + $0x30] sm:$0xff] %v856
          %873 = vst [vmem:[%s329 + $0x38] sm:$0xff] %v857
          %874 = vst [vmem:[%s329 + $0x40] sm:$0xff] %v858
          %875 = vst [vmem:[%s329 + $0x48] sm:$0xff] %v859
          %876 = vst [vmem:[%s329 + $0x50] sm:$0xff] %v860
          %877 = vst [vmem:[%s329 + $0x58] sm:$0xff] %v861
          %878 = vst [vmem:[%s329 + $0x60] sm:$0xff] %v862
          %879 = vst [vmem:[%s329 + $0x68] sm:$0xff] %v863
          %880 = vst [vmem:[%s329 + $0x70] sm:$0xff] %v864
          %881 = vst [vmem:[%s329 + $0x78] sm:$0xff] %v865
        $region89: #{tpu_custom_call.1} parent=72 // pred_fallthru
          _
        %s882 = sand.u32 %s134, 1
        %s883 = scalar_lea.sflag [#allocation5], %s882
        %s884 = sand.u32 %s134, 1
        %s885 = smul.addr %s884, 128
        %s886 = scalar_lea.vmem [#allocation4], %s885
        // Predicated region
        $region90: #{tpu_custom_call.1} parent=72 // pred_check
          %p887 = pneg %p144
        $region91: #{tpu_custom_call.1} parent=72 // pred_check_branch
          %889 = sbr.rel (%p887) target = $region93
        $region92: #{tpu_custom_call.1} parent=72 // pred_region
          %s890 = smul.u32 16, %s22
          %s892 = ssub.s32 2048, 2048
          %893 = vsyncadd %s883, %s892
          %s894 = smul.addr %s890, 128
          %s895 = scalar_lea.hbm %s4, %s894
          %s896 = sshll.u32 %s886, 4
          %s897 = int_to_ptr.vmem [resolvable:$true] %s896
          %902 = dma.vmem_to_hbm [thread:$0]  %s897, 2048, %s895, %s883, 128, 128, 8
        $region93: #{tpu_custom_call.1} parent=72 // pred_fallthru
          _
      $region73: #{tpu_custom_call.1} parent=5 // pred_fallthru
        _
      %p903 = scmp.le.s32.totalorder 2, %s13
      // Predicated region
      $region94: #{tpu_custom_call.1} parent=5 // pred_check
        %p904 = pneg %p903
      $region95: #{tpu_custom_call.1} parent=5 // pred_check_branch
        %906 = sbr.rel (%p904) target = $region97
      $region96: #{tpu_custom_call.1} parent=5 // pred_region
        %s907 = ssub.s32 %s13, 2
        // Predicated region
        $region98: #{tpu_custom_call.1} parent=96 // pred_check
          %p908 = pneg %p150
        $region99: #{tpu_custom_call.1} parent=96 // pred_check_branch
          %910 = sbr.rel (%p908) target = $region101
        $region100: #{tpu_custom_call.1} parent=96 // pred_region
          %s911 = sand.u32 %s135, 1
          %s912 = scalar_lea.sflag [#allocation5], %s911
          %s913 = sand.u32 %s135, 1
          %s914 = smul.addr %s913, 128
          %s915 = scalar_lea.vmem [#allocation4], %s914
          %916 = dma.done %s912, 2048
        $region101: #{tpu_custom_call.1} parent=96 // pred_fallthru
          _
      $region97: #{tpu_custom_call.1} parent=5 // pred_fallthru
        _
    $region6: #{tpu_custom_call.1} parent=1 // loop_footer
      %s17 = sadd.s32 1, %s13
    $region7: #{tpu_custom_call.1} parent=1 // loop_footer_branch
      %12 = sbr.rel target = $region3
    $region8: #{tpu_custom_call.1} parent=1 // loop_exit
      _
    %917 = vsyncpa [#allocation5], 1
    %s918 = scalar_lea.sflag [#allocation5], 1
    %919 = vsyncpa %s918, 1

</llo_original>
